<compile_context>
chip_gen: v6e
topology: v6e:2x2x1
jax: 0.10.0
libtpu: 0.0.40
codegen_flags: <defaults>
</compile_context>

<pallas_src>
import jax
import jax.numpy as jnp
from jax.experimental import pallas as pl
from jax.experimental.pallas import tpu as pltpu


def _round_up(x, m):
    return (x + m - 1) // m * m


def _vmem_limit(nbytes_needed):
    # Generous headroom for Mosaic-internal scratch, floored above the small
    # scoped defaults and capped at 64 MiB so the request is valid on every
    # generation (v7x has 64 MiB physical VMEM per TensorCore).
    return int(min(max(nbytes_needed * 5 // 4 + (4 << 20), 16 << 20), 64 << 20))


# ---------------------------------------------------------------------------
# Stage 1: build the DoRA-adapted (3*dim, dim) weight once, column-tiled.
# ---------------------------------------------------------------------------
def _dora_adapt_kernel(w_ref, mq_ref, mv_ref,
                       laq_ref, lbq_ref, lav_ref, lbv_ref, nw_ref):
    dim = laq_ref.shape[0]

    def _branch(row0, la_ref, lb_ref, m_ref):
        # rank-r LoRA update for this column slab: (dim, r) @ (r, tn) -> (dim, tn)
        lora = jnp.dot(la_ref[...].astype(jnp.float32),
                       lb_ref[...].astype(jnp.float32),
                       preferred_element_type=jnp.float32)
        adapted = w_ref[row0:row0 + dim, :].astype(jnp.float32) + lora
        # Fused DoRA rescale: m * rsqrt(sum(col^2)) -> one EUP rsqrt + one mul.
        scale = m_ref[...].astype(jnp.float32) * jax.lax.rsqrt(
            jnp.sum(adapted * adapted, axis=0, keepdims=True))
        nw_ref[row0:row0 + dim, :] = (adapted * scale).astype(nw_ref.dtype)

    _branch(0, laq_ref, lbq_ref, mq_ref)                               # Q
    nw_ref[dim:2 * dim, :] = w_ref[dim:2 * dim, :].astype(nw_ref.dtype)  # frozen K
    _branch(2 * dim, lav_ref, lbv_ref, mv_ref)                         # V


def _build_dora_weights(weight, m_q, m_v,
                        lora_A_q, lora_B_q, lora_A_v, lora_B_v,
                        out_dtype, *, col_tile_cap=256):
    three_dim, dim = weight.shape
    r = lora_A_q.shape[-1]

    # Tile the independent column (lane) axis so this one-shot kernel scales
    # to big dims (>=1024) without exceeding the scoped-VMEM defaults.
    tn = dim
    if dim > col_tile_cap and dim % 128 == 0:
        for cand in range(col_tile_cap - col_tile_cap % 128, 127, -128):
            if dim % cand == 0:
                tn = cand
                break
    grid = (dim // tn,)

    in_specs = [
        pl.BlockSpec((three_dim, tn), lambda j: (0, j)),  # weight column slab
        pl.BlockSpec((1, tn), lambda j: (0, j)),          # m_q columns
        pl.BlockSpec((1, tn), lambda j: (0, j)),          # m_v columns
        pl.BlockSpec((dim, r), lambda j: (0, 0)),         # lora_A_q (resident)
        pl.BlockSpec((r, tn), lambda j: (0, j)),          # lora_B_q columns
        pl.BlockSpec((dim, r), lambda j: (0, 0)),         # lora_A_v (resident)
        pl.BlockSpec((r, tn), lambda j: (0, j)),          # lora_B_v columns
    ]

    w_i = jnp.dtype(weight.dtype).itemsize
    o_i = jnp.dtype(out_dtype).itemsize
    need = (2 * three_dim * tn * (w_i + o_i)      # weight + new_w slabs (x2 buffers)
            + 4 * dim * tn * 4                    # f32 adapted_q / adapted_v temps
            + 8 * dim * r * 4 + 8 * r * tn * 4)   # LoRA factors

    return pl.pallas_call(
        _dora_adapt_kernel,
        out_shape=jax.ShapeDtypeStruct((three_dim, dim), out_dtype),
        grid=grid,
        in_specs=in_specs,
        out_specs=pl.BlockSpec((three_dim, tn), lambda j: (0, j)),
        compiler_params=pltpu.CompilerParams(
            dimension_semantics=("parallel",),
            vmem_limit_bytes=_vmem_limit(need)),
    )(weight, m_q, m_v, lora_A_q, lora_B_q, lora_A_v, lora_B_v)


# ---------------------------------------------------------------------------
# Stage 2: token-tiled projection  out = x @ new_w.T + bias.
# ---------------------------------------------------------------------------
def _qkv_proj_kernel(x_ref, nw_ref, b_ref, o_ref):
    # Cast the streamed x tile to the MXU compute dtype in-kernel (hidden VPU
    # work; no wrapper-side HBM pass), contract the last dims of x (TM, C) and
    # new_w (3C, C) — the native trans_b MXU path — and accumulate in f32.
    xv = x_ref[...].astype(nw_ref.dtype)
    acc = jax.lax.dot_general(
        xv, nw_ref[...],
        dimension_numbers=(((1,), (1,)), ((), ())),
        preferred_element_type=jnp.float32)                 # (TM, 3C)
    # Single lane-dense full-width store.
    o_ref[...] = (acc + b_ref[...].astype(jnp.float32)).astype(o_ref.dtype)


def dora_qkv(x, weight, bias, m_q, m_v,
             lora_A_q, lora_B_q, lora_A_v, lora_B_v,
             *, tm=512, compute_dtype=jnp.bfloat16, out_dtype=None):
    """x: (B, N, dim); weight: (3*dim, dim); bias: (3*dim,);
    m_q, m_v: (1, dim); lora_A_*: (dim, r); lora_B_*: (r, dim).

    compute_dtype: dtype of the MXU operands (bf16 default, f32 accumulate).
    out_dtype:     output dtype (defaults to x.dtype; pass bf16 on v5e if the
                   surrounding model accepts it — the f32 writeback dominates
                   once the matmul runs at bf16 rate)."""
    B, N, C = x.shape
    three_c = 3 * C
    out_dtype = x.dtype if out_dtype is None else out_dtype

    # Stage 1: one-shot rank-r DoRA weight adaptation, emitted directly in the
    # compute dtype (halves the new_w HBM round trip and the resident weight).
    new_w = _build_dora_weights(weight, m_q, m_v,
                                lora_A_q, lora_B_q, lora_A_v, lora_B_v,
                                out_dtype=compute_dtype)

    bn = B * N
    x2 = x.reshape(bn, C)
    bias2 = bias.reshape(1, three_c)

    # Pad the token dim to a multiple of the tile so every output tile is a
    # full-width unmasked store (no ragged last tile, no masked vst).
    tm = min(tm, _round_up(bn, 8))
    bn_p = _round_up(bn, tm)
    if bn_p != bn:
        x2 = jnp.pad(x2, ((0, bn_p - bn), (0, 0)))
    grid_m = bn_p // tm
    # TODO(synk): on v7x choose tm so grid_m stays even (both TCs get equal work).

    x_i = jnp.dtype(x.dtype).itemsize
    w_i = jnp.dtype(compute_dtype).itemsize
    b_i = jnp.dtype(bias.dtype).itemsize
    o_i = jnp.dtype(out_dtype).itemsize

    cost = pl.CostEstimate(
        flops=2 * bn_p * C * three_c,
        transcendentals=0,
        bytes_accessed=(bn_p * C * x_i + three_c * C * w_i
                        + three_c * b_i + bn_p * three_c * o_i),
    )

    vmem_need = (2 * tm * C * x_i            # streaming x tiles (double-buffered)
                 + 2 * three_c * C * w_i     # resident adapted weight
                 + 2 * three_c * b_i         # resident bias
                 + 2 * tm * three_c * o_i)   # streaming output tiles

    out = pl.pallas_call(
        _qkv_proj_kernel,
        out_shape=jax.ShapeDtypeStruct((bn_p, three_c), out_dtype),
        grid=(grid_m,),
        in_specs=[
            pl.BlockSpec((tm, C), lambda i: (i, 0)),        # x tile streams in
            # TODO(synk): pipeline_mode=pl.Buffered(1) would single-buffer the
            # two grid-invariant operands below once the installed jax version
            # supports it; bf16 already halves their footprint.
            pl.BlockSpec((three_c, C), lambda i: (0, 0)),   # adapted weight, resident
            pl.BlockSpec((1, three_c), lambda i: (0, 0)),   # bias, resident
        ],
        out_specs=pl.BlockSpec((tm, three_c), lambda i: (i, 0)),
        compiler_params=pltpu.CompilerParams(
            dimension_semantics=("parallel",),
            vmem_limit_bytes=_vmem_limit(vmem_need)),
        cost_estimate=cost,
    )(x2, new_w, bias2)

    if bn_p != bn:
        out = out[:bn]
    return out.reshape(B, N, three_c)


def dora_qkv_ref(x, weight, bias, m_q, m_v,
                 lora_A_q, lora_B_q, lora_A_v, lora_B_v):
    """Pure-JAX reference mirroring the PyTorch forward exactly (f32)."""
    dim = x.shape[-1]
    lora_q = lora_A_q @ lora_B_q
    adapted_q = weight[:dim, :] + lora_q
    col_norm_q = jnp.linalg.norm(adapted_q, axis=0, keepdims=True)
    calc_q = m_q * (adapted_q / col_norm_q)

    lora_v = lora_A_v @ lora_B_v
    adapted_v = weight[-dim:, :] + lora_v
    col_norm_v = jnp.linalg.norm(adapted_v, axis=0, keepdims=True)
    calc_v = m_v * (adapted_v / col_norm_v)

    new_w = jnp.concatenate([calc_q, weight[dim:-dim, :], calc_v], axis=0)
    return jnp.einsum('bnc,oc->bno', x, new_w) + bias


if __name__ == "__main__":
    B, N, dim, r = 2, 8, 32, 4
    key = jax.random.PRNGKey(0)
    ks = jax.random.split(key, 8)

    x = jax.random.normal(ks[0], (B, N, dim), jnp.float32)
    weight = jax.random.normal(ks[1], (3 * dim, dim), jnp.float32) * 0.05
    bias = jax.random.normal(ks[2], (3 * dim,), jnp.float32) * 0.01
    m_q = jax.random.normal(ks[3], (1, dim), jnp.float32) * 0.1 + 1.0
    m_v = jax.random.normal(ks[4], (1, dim), jnp.float32) * 0.1 + 1.0
    lora_A_q = jax.random.normal(ks[5], (dim, r), jnp.float32) * 0.02
    lora_B_q = jnp.zeros((r, dim), jnp.float32) + 0.01
    lora_A_v = jax.random.normal(ks[6], (dim, r), jnp.float32) * 0.02
    lora_B_v = jnp.zeros((r, dim), jnp.float32) + 0.01

    ref = dora_qkv_ref(x, weight, bias, m_q, m_v,
                       lora_A_q, lora_B_q, lora_A_v, lora_B_v)

    # Fast path: bf16 MXU operands, f32 accumulation (production configuration).
    out_bf16 = dora_qkv(x, weight, bias, m_q, m_v,
                        lora_A_q, lora_B_q, lora_A_v, lora_B_v,
                        compute_dtype=jnp.bfloat16)
    out_bf16 = jax.block_until_ready(out_bf16)
    assert out_bf16.shape == (B, N, 3 * dim)
    assert jnp.allclose(out_bf16, ref, atol=2e-2, rtol=2e-2), \
        "bf16-compute path mismatch vs reference"

    # Validation path: f32 operands throughout, tight tolerance vs reference.
    out_f32 = dora_qkv(x, weight, bias, m_q, m_v,
                       lora_A_q, lora_B_q, lora_A_v, lora_B_v,
                       compute_dtype=jnp.float32)
    out_f32 = jax.block_until_ready(out_f32)
    assert jnp.allclose(out_f32, ref, atol=2e-4, rtol=2e-4), \
        "f32-compute path mismatch vs reference"

    print("KERNEL_OK")
</pallas_src>

<mosaic_0001>
module attributes {stable_mosaic.version = 11 : i64} {
  func.func @_dora_adapt_kernel(%arg0: i32, %arg1: memref<96x32xf32, #tpu.memory_space<vmem>>, %arg2: memref<1x32xf32, #tpu.memory_space<vmem>>, %arg3: memref<1x32xf32, #tpu.memory_space<vmem>>, %arg4: memref<32x4xf32, #tpu.memory_space<vmem>>, %arg5: memref<4x32xf32, #tpu.memory_space<vmem>>, %arg6: memref<32x4xf32, #tpu.memory_space<vmem>>, %arg7: memref<4x32xf32, #tpu.memory_space<vmem>>, %arg8: memref<96x32xbf16, #tpu.memory_space<vmem>>) attributes {dimension_semantics = [#tpu.dimension_semantics<parallel>], iteration_bounds = array<i64: 1>, scalar_prefetch = 0 : i64, scratch_operands = 0 : i64, tpu.core_type = #tpu.core_type<tc>, window_params = [{transform_indices = @transform_0, window_bounds = array<i64: 96, 32>}, {transform_indices = @transform_1, window_bounds = array<i64: 1, 32>}, {transform_indices = @transform_2, window_bounds = array<i64: 1, 32>}, {pipeline_mode = #tpu.pipeline_mode<synchronous>, transform_indices = @transform_3, window_bounds = array<i64: 32, 4>}, {transform_indices = @transform_4, window_bounds = array<i64: 4, 32>}, {pipeline_mode = #tpu.pipeline_mode<synchronous>, transform_indices = @transform_5, window_bounds = array<i64: 32, 4>}, {transform_indices = @transform_6, window_bounds = array<i64: 4, 32>}, {transform_indices = @transform_7, window_bounds = array<i64: 96, 32>}]} {
    %c0 = arith.constant 0 : index
    %c0_0 = arith.constant 0 : index
    %0 = vector.load %arg4[%c0, %c0_0] : memref<32x4xf32, #tpu.memory_space<vmem>>, vector<32x4xf32>
    %c0_1 = arith.constant 0 : index
    %c0_2 = arith.constant 0 : index
    %1 = vector.load %arg5[%c0_1, %c0_2] : memref<4x32xf32, #tpu.memory_space<vmem>>, vector<4x32xf32>
    %cst = arith.constant dense<0.000000e+00> : vector<32x32xf32>
    %2 = tpu.matmul %0, %1, %cst {dimension_numbers = #tpu.dot_dimension_numbers<[1], [0], [0], [1], [0, 0, 1, 1], [], []>} : vector<32x4xf32>, vector<4x32xf32>, vector<32x32xf32> -> vector<32x32xf32>
    %c0_3 = arith.constant 0 : index
    %c0_4 = arith.constant 0 : index
    %3 = vector.load %arg1[%c0_3, %c0_4] : memref<96x32xf32, #tpu.memory_space<vmem>>, vector<32x32xf32>
    %4 = arith.addf %3, %2 : vector<32x32xf32>
    %c0_5 = arith.constant 0 : index
    %c0_6 = arith.constant 0 : index
    %5 = vector.load %arg2[%c0_5, %c0_6] : memref<1x32xf32, #tpu.memory_space<vmem>>, vector<1x32xf32>
    %6 = arith.mulf %4, %4 : vector<32x32xf32>
    %cst_7 = arith.constant dense<0.000000e+00> : vector<32xf32>
    %7 = vector.multi_reduction <add>, %6, %cst_7 [0] : vector<32x32xf32> to vector<32xf32>
    %8 = vector.shape_cast %7 : vector<32xf32> to vector<1x32xf32>
    %9 = math.rsqrt %8 : vector<1x32xf32>
    %10 = arith.mulf %5, %9 : vector<1x32xf32>
    %11 = vector.broadcast %10 : vector<1x32xf32> to vector<32x32xf32>
    %12 = arith.mulf %4, %11 : vector<32x32xf32>
    %13 = arith.truncf %12 : vector<32x32xf32> to vector<32x32xbf16>
    %c0_8 = arith.constant 0 : index
    %c0_9 = arith.constant 0 : index
    %14 = vector.load %arg8[%c0_8, %c0_9] : memref<96x32xbf16, #tpu.memory_space<vmem>>, vector<32x32xbf16>
    tpu.vector_store %arg8[%c0_8, %c0_9], %13 {strides = array<i32>} : memref<96x32xbf16, #tpu.memory_space<vmem>>, vector<32x32xbf16>,
    %c32 = arith.constant 32 : index
    %c0_10 = arith.constant 0 : index
    %15 = vector.load %arg1[%c32, %c0_10] : memref<96x32xf32, #tpu.memory_space<vmem>>, vector<32x32xf32>
    %16 = arith.truncf %15 : vector<32x32xf32> to vector<32x32xbf16>
    %c32_11 = arith.constant 32 : index
    %c0_12 = arith.constant 0 : index
    %17 = vector.load %arg8[%c32_11, %c0_12] : memref<96x32xbf16, #tpu.memory_space<vmem>>, vector<32x32xbf16>
    tpu.vector_store %arg8[%c32_11, %c0_12], %16 {strides = array<i32>} : memref<96x32xbf16, #tpu.memory_space<vmem>>, vector<32x32xbf16>,
    %c0_13 = arith.constant 0 : index
    %c0_14 = arith.constant 0 : index
    %18 = vector.load %arg6[%c0_13, %c0_14] : memref<32x4xf32, #tpu.memory_space<vmem>>, vector<32x4xf32>
    %c0_15 = arith.constant 0 : index
    %c0_16 = arith.constant 0 : index
    %19 = vector.load %arg7[%c0_15, %c0_16] : memref<4x32xf32, #tpu.memory_space<vmem>>, vector<4x32xf32>
    %cst_17 = arith.constant dense<0.000000e+00> : vector<32x32xf32>
    %20 = tpu.matmul %18, %19, %cst_17 {dimension_numbers = #tpu.dot_dimension_numbers<[1], [0], [0], [1], [0, 0, 1, 1], [], []>} : vector<32x4xf32>, vector<4x32xf32>, vector<32x32xf32> -> vector<32x32xf32>
    %c64 = arith.constant 64 : index
    %c0_18 = arith.constant 0 : index
    %21 = vector.load %arg1[%c64, %c0_18] : memref<96x32xf32, #tpu.memory_space<vmem>>, vector<32x32xf32>
    %22 = arith.addf %21, %20 : vector<32x32xf32>
    %c0_19 = arith.constant 0 : index
    %c0_20 = arith.constant 0 : index
    %23 = vector.load %arg3[%c0_19, %c0_20] : memref<1x32xf32, #tpu.memory_space<vmem>>, vector<1x32xf32>
    %24 = arith.mulf %22, %22 : vector<32x32xf32>
    %cst_21 = arith.constant dense<0.000000e+00> : vector<32xf32>
    %25 = vector.multi_reduction <add>, %24, %cst_21 [0] : vector<32x32xf32> to vector<32xf32>
    %26 = vector.shape_cast %25 : vector<32xf32> to vector<1x32xf32>
    %27 = math.rsqrt %26 : vector<1x32xf32>
    %28 = arith.mulf %23, %27 : vector<1x32xf32>
    %29 = vector.broadcast %28 : vector<1x32xf32> to vector<32x32xf32>
    %30 = arith.mulf %22, %29 : vector<32x32xf32>
    %31 = arith.truncf %30 : vector<32x32xf32> to vector<32x32xbf16>
    %c64_22 = arith.constant 64 : index
    %c0_23 = arith.constant 0 : index
    %32 = vector.load %arg8[%c64_22, %c0_23] : memref<96x32xbf16, #tpu.memory_space<vmem>>, vector<32x32xbf16>
    tpu.vector_store %arg8[%c64_22, %c0_23], %31 {strides = array<i32>} : memref<96x32xbf16, #tpu.memory_space<vmem>>, vector<32x32xbf16>,
    return
  }
  func.func @transform_0(%arg0: i32) -> (i32, i32) {
    %c0_i32 = arith.constant 0 : i32
    %c0_i32_0 = arith.constant 0 : i32
    return %c0_i32, %arg0 : i32, i32
  }
  func.func @transform_1(%arg0: i32) -> (i32, i32) {
    %c0_i32 = arith.constant 0 : i32
    %c0_i32_0 = arith.constant 0 : i32
    return %c0_i32, %arg0 : i32, i32
  }
  func.func @transform_2(%arg0: i32) -> (i32, i32) {
    %c0_i32 = arith.constant 0 : i32
    %c0_i32_0 = arith.constant 0 : i32
    return %c0_i32, %arg0 : i32, i32
  }
  func.func @transform_3(%arg0: i32) -> (i32, i32) {
    %c0_i32 = arith.constant 0 : i32
    %c0_i32_0 = arith.constant 0 : i32
    %c0_i32_1 = arith.constant 0 : i32
    return %c0_i32, %c0_i32_0 : i32, i32
  }
  func.func @transform_4(%arg0: i32) -> (i32, i32) {
    %c0_i32 = arith.constant 0 : i32
    %c0_i32_0 = arith.constant 0 : i32
    return %c0_i32, %arg0 : i32, i32
  }
  func.func @transform_5(%arg0: i32) -> (i32, i32) {
    %c0_i32 = arith.constant 0 : i32
    %c0_i32_0 = arith.constant 0 : i32
    %c0_i32_1 = arith.constant 0 : i32
    return %c0_i32, %c0_i32_0 : i32, i32
  }
  func.func @transform_6(%arg0: i32) -> (i32, i32) {
    %c0_i32 = arith.constant 0 : i32
    %c0_i32_0 = arith.constant 0 : i32
    return %c0_i32, %arg0 : i32, i32
  }
  func.func @transform_7(%arg0: i32) -> (i32, i32) {
    %c0_i32 = arith.constant 0 : i32
    %c0_i32_0 = arith.constant 0 : i32
    return %c0_i32, %arg0 : i32, i32
  }
}

</mosaic_0001>

<llo_original>
// kernel: tpu_custom_call.1
$region0: #{tpu_custom_call.1}
  #allocation0 [shape = 'u32[]', space=smem, size = 0x4, offset = 0x4, fixed_abs, tag = 'smem constant byte address 0x4 - core index']
  #allocation1 [shape = 'u32[144,128]{1,0:T(1,128)}', space=vmem, size = 0x12000, scoped, tag = 'internal scratch']
  %s0 = inlined_call_operand.vmem [shape: f32[96,32], index: 0, kind: input, shape index: {}]
  %s1 = inlined_call_operand.vmem [shape: f32[1,32], index: 1, kind: input, shape index: {}]
  %s2 = inlined_call_operand.vmem [shape: f32[1,32], index: 2, kind: input, shape index: {}]
  %s3 = inlined_call_operand.vmem [shape: f32[32,4], index: 3, kind: input, shape index: {}]
  %s4 = inlined_call_operand.vmem [shape: f32[4,32], index: 4, kind: input, shape index: {}]
  %s5 = inlined_call_operand.vmem [shape: f32[32,4], index: 5, kind: input, shape index: {}]
  %s6 = inlined_call_operand.vmem [shape: f32[4,32], index: 6, kind: input, shape index: {}]
  %s7 = inlined_call_operand.vmem [shape: bf16[96,32], index: 7, kind: output, shape index: {}]
  %s8 = sld [smem:[#allocation0]]
  $region38: #{tpu_custom_call.1} parent=0
    _
  %s10 = ssub.s32 1, %s8
  %s11 = scalar_select 0, %s10, %s8
  // Predicated region
  $region2: #{tpu_custom_call.1} parent=0 // pred_check
    _
  $region3: #{tpu_custom_call.1} parent=0 // pred_check_branch
    %13 = sbr.rel (0) target = $region5
  $region4: #{tpu_custom_call.1} parent=0 // pred_region
    _
  $region5: #{tpu_custom_call.1} parent=0 // pred_fallthru
    _
  // Predicated region
  $region6: #{tpu_custom_call.1} parent=0 // pred_check
    _
  $region7: #{tpu_custom_call.1} parent=0 // pred_check_branch
    %15 = sbr.rel (0) target = $region9
  $region8: #{tpu_custom_call.1} parent=0 // pred_region
    _
  $region9: #{tpu_custom_call.1} parent=0 // pred_fallthru
    _
  // Predicated region
  $region10: #{tpu_custom_call.1} parent=0 // pred_check
    _
  $region11: #{tpu_custom_call.1} parent=0 // pred_check_branch
    %17 = sbr.rel (0) target = $region13
  $region12: #{tpu_custom_call.1} parent=0 // pred_region
    _
  $region13: #{tpu_custom_call.1} parent=0 // pred_fallthru
    _
  // Predicated region
  $region14: #{tpu_custom_call.1} parent=0 // pred_check
    _
  $region15: #{tpu_custom_call.1} parent=0 // pred_check_branch
    %19 = sbr.rel (0) target = $region17
  $region16: #{tpu_custom_call.1} parent=0 // pred_region
    _
  $region17: #{tpu_custom_call.1} parent=0 // pred_fallthru
    _
  // Predicated region
  $region18: #{tpu_custom_call.1} parent=0 // pred_check
    _
  $region19: #{tpu_custom_call.1} parent=0 // pred_check_branch
    %21 = sbr.rel (0) target = $region21
  $region20: #{tpu_custom_call.1} parent=0 // pred_region
    _
  $region21: #{tpu_custom_call.1} parent=0 // pred_fallthru
    _
  // Predicated region
  $region22: #{tpu_custom_call.1} parent=0 // pred_check
    _
  $region23: #{tpu_custom_call.1} parent=0 // pred_check_branch
    %23 = sbr.rel (0) target = $region25
  $region24: #{tpu_custom_call.1} parent=0 // pred_region
    _
  $region25: #{tpu_custom_call.1} parent=0 // pred_fallthru
    _
  // Predicated region
  $region26: #{tpu_custom_call.1} parent=0 // pred_check
    _
  $region27: #{tpu_custom_call.1} parent=0 // pred_check_branch
    %25 = sbr.rel (0) target = $region29
  $region28: #{tpu_custom_call.1} parent=0 // pred_region
    _
  $region29: #{tpu_custom_call.1} parent=0 // pred_fallthru
    _
  %v26 = vld [vmem:[%s3] sm:$0xff]
  %v27 = vld [vmem:[%s3 + $0x8] sm:$0xff]
  %v28 = vld [vmem:[%s3 + $0x10] sm:$0xff]
  %v29 = vld [vmem:[%s3 + $0x18] sm:$0xff]
  %v30 = vld [vmem:[%s4] sm:$0xf]
  %vm31 = vcmask 31744
  %v33 = vsel %vm31, %v26, 0
  %v36 = vsel %vm31, %v27, 0
  %v39 = vsel %vm31, %v28, 0
  %v42 = vsel %vm31, %v29, 0
  %vm44 = vcmask 1043456
  %v46 = vsel %vm44, %v30, 0
  %48 = vmatprep.subr.mxu0 0.0
  %49 = vmatpush1.msra.mxu0 0.0
  %50 = vmatprep.subr.mxu0 0.0
  %51 = vmatpush1.msra.mxu0 0.0
  %52 = vmatprep.subr.mxu0 0.0
  %53 = vmatpush1.msra.mxu0 0.0
  %54 = vmatprep.subr.mxu0 0.0
  %55 = vmatpush1.msra.mxu0 0.0
  %56 = vmatprep.subr.mxu0 0.0
  %57 = vmatpush1.msra.mxu0 0.0
  %58 = vmatprep.subr.mxu0 0.0
  %59 = vmatpush1.msra.mxu0 0.0
  %60 = vmatprep.subr.mxu0 0.0
  %61 = vmatpush1.msra.mxu0 0.0
  %62 = vmatprep.subr.mxu0 0.0
  %63 = vmatpush1.msra.mxu0 0.0
  %64 = vmatprep.subr.mxu0 0.0
  %65 = vmatpush1.msra.mxu0 0.0
  %66 = vmatprep.subr.mxu0 0.0
  %67 = vmatpush1.msra.mxu0 0.0
  %68 = vmatprep.subr.mxu0 0.0
  %69 = vmatpush1.msra.mxu0 0.0
  %70 = vmatprep.subr.mxu0 0.0
  %71 = vmatpush1.msra.mxu0 0.0
  %72 = vmatprep.subr.mxu0 0.0
  %73 = vmatpush1.msra.mxu0 0.0
  %74 = vmatprep.subr.mxu0 0.0
  %75 = vmatpush1.msra.mxu0 0.0
  %76 = vmatprep.subr.mxu0 0.0
  %77 = vmatpush1.msra.mxu0 0.0
  %78 = vmatprep.subr.mxu0 0.0
  %79 = vmatpush1.msra.mxu0 %v46
  %80 = vmatprep.subr.mxu0 0.0
  %81 = vmatpush2.msra.mxu0 0.0
  %82 = vmatprep.subr.mxu0 0.0
  %83 = vmatpush2.msra.mxu0 0.0
  %84 = vmatprep.subr.mxu0 0.0
  %85 = vmatpush2.msra.mxu0 0.0
  %86 = vmatprep.subr.mxu0 0.0
  %87 = vmatpush2.msra.mxu0 0.0
  %88 = vmatprep.subr.mxu0 0.0
  %89 = vmatpush2.msra.mxu0 0.0
  %90 = vmatprep.subr.mxu0 0.0
  %91 = vmatpush2.msra.mxu0 0.0
  %92 = vmatprep.subr.mxu0 0.0
  %93 = vmatpush2.msra.mxu0 0.0
  %94 = vmatprep.subr.mxu0 0.0
  %95 = vmatpush2.msra.mxu0 0.0
  %96 = vmatprep.subr.mxu0 0.0
  %97 = vmatpush2.msra.mxu0 0.0
  %98 = vmatprep.subr.mxu0 0.0
  %99 = vmatpush2.msra.mxu0 0.0
  %100 = vmatprep.subr.mxu0 0.0
  %101 = vmatpush2.msra.mxu0 0.0
  %102 = vmatprep.subr.mxu0 0.0
  %103 = vmatpush2.msra.mxu0 0.0
  %104 = vmatprep.subr.mxu0 0.0
  %105 = vmatpush2.msra.mxu0 0.0
  %106 = vmatprep.subr.mxu0 0.0
  %107 = vmatpush2.msra.mxu0 0.0
  %108 = vmatprep.subr.mxu0 0.0
  %109 = vmatpush2.msra.mxu0 0.0
  %110 = vmatprep.subr.mxu0 0.0
  %111 = vmatpush2.msra.mxu0 0.0
  %112 = vmatprep.mubr.f32.mxu0 0.0
  %113 = vmatmul.mubr.f32.gmra.mxu0 %v33
  %v114 = vpop.f32.mrf.mxu0
  %v115 = vadd.f32 0.0, %v114
  %v116 = vpop.f32.mrf.mxu0
  %117 = vmatprep.mubr.f32.mxu0 0.0
  %118 = vmatmul.mubr.f32.gmra.mxu0 %v36
  %v119 = vpop.f32.mrf.mxu0
  %v120 = vadd.f32 0.0, %v119
  %v121 = vpop.f32.mrf.mxu0
  %122 = vmatprep.mubr.f32.mxu0 0.0
  %123 = vmatmul.mubr.f32.gmra.mxu0 %v39
  %v124 = vpop.f32.mrf.mxu0
  %v125 = vadd.f32 0.0, %v124
  %v126 = vpop.f32.mrf.mxu0
  %127 = vmatprep.mubr.f32.mxu0 0.0
  %128 = vmatmul.mubr.f32.gmra.mxu0 %v42
  %v129 = vpop.f32.mrf.mxu0
  %v130 = vadd.f32 0.0, %v129
  %v131 = vpop.f32.mrf.mxu0
  %132 = vdwg.mxu0
  %v133 = vld [vmem:[%s0] sm:$0xff]
  %v134 = vld [vmem:[%s0 + $0x8] sm:$0xff]
  %v135 = vld [vmem:[%s0 + $0x10] sm:$0xff]
  %v136 = vld [vmem:[%s0 + $0x18] sm:$0xff]
  %v137 = vadd.f32 %v133, %v115
  %v138 = vadd.f32 %v134, %v120
  %v139 = vadd.f32 %v135, %v125
  %v140 = vadd.f32 %v136, %v130
  %v141 = vld [vmem:[%s1] sm:$0x1]
  %v142 = vmul.f32 %v137, %v137
  %v143 = vmul.f32 %v138, %v138
  %v144 = vmul.f32 %v139, %v139
  %v145 = vmul.f32 %v140, %v140
  %vm146 = vcmask 261120
  %v147 = vsel %vm146, %v142, 0.0
  %v148 = vsel %vm146, %v143, 0.0
  %v149 = vadd.f32 %v147, %v148
  %v150 = vsel %vm146, %v144, 0.0
  %v151 = vadd.f32 %v149, %v150
  %v152 = vsel %vm146, %v145, 0.0
  %v153 = vadd.f32 %v151, %v152
  %v154 = vrot.slane %v153, 4
  %v155 = vadd.f32 %v153, %v154
  %v156 = vrot.slane %v155, 2
  %v157 = vadd.f32 %v155, %v156
  %v158 = vrot.slane %v157, 1
  %v159 = vadd.f32 %v157, %v158
  %v160 = vrsqrt.pop %v159
  %v161 = vmul.f32 %v141, %v160
  %v163 = vlaneseq
  %v164 = vshrl.u32 %v163, 7
  %v165 = vsub.s32 0, %v164
  %v166 = vrot.slane %v161, %v165
  %v168 = vmul.f32 %v137, %v166
  %v169 = vmul.f32 %v138, %v166
  %v170 = vmul.f32 %v139, %v166
  %v171 = vmul.f32 %v140, %v166
  %v172 = vpack.c.bf16 %v169, %v168
  %v173 = vpack.c.bf16 %v171, %v170
  %v176 = vunpack.c.l.b16 %v172
  %v177 = vunpack.c.h.b16 %v172
  %v178 = vunpack.c.l.b16 %v173
  %v179 = vunpack.c.h.b16 %v173
  %v180 = vpack.c.b16 %v176, %v176
  %v181 = vpack.c.b16 %v177, %v177
  %v182 = vpack.c.b16 %v178, %v178
  %v183 = vpack.c.b16 %v179, %v179
  %vm188 = vcmask 257024
  %189 = vst.msk [vmem:[%s7] sm:$0xf] %vm188, %v180
  %190 = vst.msk [vmem:[%s7 + $0x4] sm:$0xf] %vm188, %v181
  %191 = vst.msk [vmem:[%s7 + $0x8] sm:$0xf] %vm188, %v182
  %192 = vst.msk [vmem:[%s7 + $0xc] sm:$0xf] %vm188, %v183
  %v193 = vld [vmem:[%s0 + $0x20] sm:$0xff]
  %v194 = vld [vmem:[%s0 + $0x28] sm:$0xff]
  %v195 = vld [vmem:[%s0 + $0x30] sm:$0xff]
  %v196 = vld [vmem:[%s0 + $0x38] sm:$0xff]
  %v197 = vpack.c.bf16 %v194, %v193
  %v198 = vpack.c.bf16 %v196, %v195
  %v201 = vunpack.c.l.b16 %v197
  %v202 = vunpack.c.h.b16 %v197
  %v203 = vunpack.c.l.b16 %v198
  %v204 = vunpack.c.h.b16 %v198
  %v205 = vpack.c.b16 %v201, %v201
  %v206 = vpack.c.b16 %v202, %v202
  %v207 = vpack.c.b16 %v203, %v203
  %v208 = vpack.c.b16 %v204, %v204
  %213 = vst.msk [vmem:[%s7 + $0x10] sm:$0xf] %vm188, %v205
  %214 = vst.msk [vmem:[%s7 + $0x14] sm:$0xf] %vm188, %v206
  %215 = vst.msk [vmem:[%s7 + $0x18] sm:$0xf] %vm188, %v207
  %216 = vst.msk [vmem:[%s7 + $0x1c] sm:$0xf] %vm188, %v208
  %v217 = vld [vmem:[%s5] sm:$0xff]
  %v218 = vld [vmem:[%s5 + $0x8] sm:$0xff]
  %v219 = vld [vmem:[%s5 + $0x10] sm:$0xff]
  %v220 = vld [vmem:[%s5 + $0x18] sm:$0xff]
  %v221 = vld [vmem:[%s6] sm:$0xf]
  %v223 = vsel %vm31, %v217, 0
  %v226 = vsel %vm31, %v218, 0
  %v229 = vsel %vm31, %v219, 0
  %v232 = vsel %vm31, %v220, 0
  %v235 = vsel %vm44, %v221, 0
  %237 = vmatprep.subr.mxu0 0.0
  %238 = vmatpush1.msra.mxu0 0.0
  %239 = vmatprep.subr.mxu0 0.0
  %240 = vmatpush1.msra.mxu0 0.0
  %241 = vmatprep.subr.mxu0 0.0
  %242 = vmatpush1.msra.mxu0 0.0
  %243 = vmatprep.subr.mxu0 0.0
  %244 = vmatpush1.msra.mxu0 0.0
  %245 = vmatprep.subr.mxu0 0.0
  %246 = vmatpush1.msra.mxu0 0.0
  %247 = vmatprep.subr.mxu0 0.0
  %248 = vmatpush1.msra.mxu0 0.0
  %249 = vmatprep.subr.mxu0 0.0
  %250 = vmatpush1.msra.mxu0 0.0
  %251 = vmatprep.subr.mxu0 0.0
  %252 = vmatpush1.msra.mxu0 0.0
  %253 = vmatprep.subr.mxu0 0.0
  %254 = vmatpush1.msra.mxu0 0.0
  %255 = vmatprep.subr.mxu0 0.0
  %256 = vmatpush1.msra.mxu0 0.0
  %257 = vmatprep.subr.mxu0 0.0
  %258 = vmatpush1.msra.mxu0 0.0
  %259 = vmatprep.subr.mxu0 0.0
  %260 = vmatpush1.msra.mxu0 0.0
  %261 = vmatprep.subr.mxu0 0.0
  %262 = vmatpush1.msra.mxu0 0.0
  %263 = vmatprep.subr.mxu0 0.0
  %264 = vmatpush1.msra.mxu0 0.0
  %265 = vmatprep.subr.mxu0 0.0
  %266 = vmatpush1.msra.mxu0 0.0
  %267 = vmatprep.subr.mxu0 0.0
  %268 = vmatpush1.msra.mxu0 %v235
  %269 = vmatprep.subr.mxu0 0.0
  %270 = vmatpush2.msra.mxu0 0.0
  %271 = vmatprep.subr.mxu0 0.0
  %272 = vmatpush2.msra.mxu0 0.0
  %273 = vmatprep.subr.mxu0 0.0
  %274 = vmatpush2.msra.mxu0 0.0
  %275 = vmatprep.subr.mxu0 0.0
  %276 = vmatpush2.msra.mxu0 0.0
  %277 = vmatprep.subr.mxu0 0.0
  %278 = vmatpush2.msra.mxu0 0.0
  %279 = vmatprep.subr.mxu0 0.0
  %280 = vmatpush2.msra.mxu0 0.0
  %281 = vmatprep.subr.mxu0 0.0
  %282 = vmatpush2.msra.mxu0 0.0
  %283 = vmatprep.subr.mxu0 0.0
  %284 = vmatpush2.msra.mxu0 0.0
  %285 = vmatprep.subr.mxu0 0.0
  %286 = vmatpush2.msra.mxu0 0.0
  %287 = vmatprep.subr.mxu0 0.0
  %288 = vmatpush2.msra.mxu0 0.0
  %289 = vmatprep.subr.mxu0 0.0
  %290 = vmatpush2.msra.mxu0 0.0
  %291 = vmatprep.subr.mxu0 0.0
  %292 = vmatpush2.msra.mxu0 0.0
  %293 = vmatprep.subr.mxu0 0.0
  %294 = vmatpush2.msra.mxu0 0.0
  %295 = vmatprep.subr.mxu0 0.0
  %296 = vmatpush2.msra.mxu0 0.0
  %297 = vmatprep.subr.mxu0 0.0
  %298 = vmatpush2.msra.mxu0 0.0
  %299 = vmatprep.subr.mxu0 0.0
  %300 = vmatpush2.msra.mxu0 0.0
  %301 = vmatprep.mubr.f32.mxu0 0.0
  %302 = vmatmul.mubr.f32.gmra.mxu0 %v223
  %v303 = vpop.f32.mrf.mxu0
  %v304 = vadd.f32 0.0, %v303
  %v305 = vpop.f32.mrf.mxu0
  %306 = vmatprep.mubr.f32.mxu0 0.0
  %307 = vmatmul.mubr.f32.gmra.mxu0 %v226
  %v308 = vpop.f32.mrf.mxu0
  %v309 = vadd.f32 0.0, %v308
  %v310 = vpop.f32.mrf.mxu0
  %311 = vmatprep.mubr.f32.mxu0 0.0
  %312 = vmatmul.mubr.f32.gmra.mxu0 %v229
  %v313 = vpop.f32.mrf.mxu0
  %v314 = vadd.f32 0.0, %v313
  %v315 = vpop.f32.mrf.mxu0
  %316 = vmatprep.mubr.f32.mxu0 0.0
  %317 = vmatmul.mubr.f32.gmra.mxu0 %v232
  %v318 = vpop.f32.mrf.mxu0
  %v319 = vadd.f32 0.0, %v318
  %v320 = vpop.f32.mrf.mxu0
  %321 = vdwg.mxu0
  %v322 = vld [vmem:[%s0 + $0x40] sm:$0xff]
  %v323 = vld [vmem:[%s0 + $0x48] sm:$0xff]
  %v324 = vld [vmem:[%s0 + $0x50] sm:$0xff]
  %v325 = vld [vmem:[%s0 + $0x58] sm:$0xff]
  %v326 = vadd.f32 %v322, %v304
  %v327 = vadd.f32 %v323, %v309
  %v328 = vadd.f32 %v324, %v314
  %v329 = vadd.f32 %v325, %v319
  %v330 = vld [vmem:[%s2] sm:$0x1]
  %v331 = vmul.f32 %v326, %v326
  %v332 = vmul.f32 %v327, %v327
  %v333 = vmul.f32 %v328, %v328
  %v334 = vmul.f32 %v329, %v329
  %v335 = vsel %vm146, %v331, 0.0
  %v336 = vsel %vm146, %v332, 0.0
  %v337 = vadd.f32 %v335, %v336
  %v338 = vsel %vm146, %v333, 0.0
  %v339 = vadd.f32 %v337, %v338
  %v340 = vsel %vm146, %v334, 0.0
  %v341 = vadd.f32 %v339, %v340
  %v342 = vrot.slane %v341, 4
  %v343 = vadd.f32 %v341, %v342
  %v344 = vrot.slane %v343, 2
  %v345 = vadd.f32 %v343, %v344
  %v346 = vrot.slane %v345, 1
  %v347 = vadd.f32 %v345, %v346
  %v348 = vrsqrt.pop %v347
  %v349 = vmul.f32 %v330, %v348
  %v351 = vlaneseq
  %v352 = vshrl.u32 %v351, 7
  %v353 = vsub.s32 0, %v352
  %v354 = vrot.slane %v349, %v353
  %v356 = vmul.f32 %v326, %v354
  %v357 = vmul.f32 %v327, %v354
  %v358 = vmul.f32 %v328, %v354
  %v359 = vmul.f32 %v329, %v354
  %v360 = vpack.c.bf16 %v357, %v356
  %v361 = vpack.c.bf16 %v359, %v358
  %v364 = vunpack.c.l.b16 %v360
  %v365 = vunpack.c.h.b16 %v360
  %v366 = vunpack.c.l.b16 %v361
  %v367 = vunpack.c.h.b16 %v361
  %v368 = vpack.c.b16 %v364, %v364
  %v369 = vpack.c.b16 %v365, %v365
  %v370 = vpack.c.b16 %v366, %v366
  %v371 = vpack.c.b16 %v367, %v367
  %376 = vst.msk [vmem:[%s7 + $0x20] sm:$0xf] %vm188, %v368
  %377 = vst.msk [vmem:[%s7 + $0x24] sm:$0xf] %vm188, %v369
  %378 = vst.msk [vmem:[%s7 + $0x28] sm:$0xf] %vm188, %v370
  %379 = vst.msk [vmem:[%s7 + $0x2c] sm:$0xf] %vm188, %v371
  // Predicated region
  $region30: #{tpu_custom_call.1} parent=0 // pred_check
    _
  $region31: #{tpu_custom_call.1} parent=0 // pred_check_branch
    %381 = sbr.rel (0) target = $region33
  $region32: #{tpu_custom_call.1} parent=0 // pred_region
    _
  $region33: #{tpu_custom_call.1} parent=0 // pred_fallthru
    _
  // Predicated region
  $region34: #{tpu_custom_call.1} parent=0 // pred_check
    _
  $region35: #{tpu_custom_call.1} parent=0 // pred_check_branch
    %383 = sbr.rel (0) target = $region37
  $region36: #{tpu_custom_call.1} parent=0 // pred_region
    _
  $region37: #{tpu_custom_call.1} parent=0 // pred_fallthru
    _

</llo_original>
